<compile_context>
chip_gen: v7x
topology: tpu7x:2x2x1
jax: 0.10.0
libtpu: 0.0.40
codegen_flags: <defaults>
</compile_context>

<pallas_src>
import jax
import jax.numpy as jnp
from jax import lax
from jax.experimental import pallas as pl
from jax.experimental.pallas import tpu as pltpu


# ----------------------------------------------------------------------------- kernel
def fraud_mlp_kernel(x_ref, w1_ref, b1_ref, w2_ref, b2_ref,
                     w3_ref, b3_ref, w4r_ref, b4_ref, o_ref):
    """One grid step: [tb, D] f32 batch tile -> lane-dense [1, tb] probability row."""
    mm_dtype = w1_ref.dtype  # bf16 on the fast path, f32 otherwise

    # Cast x in-kernel (VPU, hidden under MXU pushes) instead of in the wrapper.
    x = x_ref[...].astype(mm_dtype)

    # fc1 + ReLU  (MXU matmul, f32 accumulate; bias / activation in f32)
    h = jnp.dot(x, w1_ref[...], preferred_element_type=jnp.float32)
    h = jnp.maximum(h + b1_ref[...], 0.0)

    # fc2 + ReLU
    h = jnp.dot(h.astype(mm_dtype), w2_ref[...],
                preferred_element_type=jnp.float32)
    h = jnp.maximum(h + b2_ref[...], 0.0)

    # fc3 + ReLU
    h = jnp.dot(h.astype(mm_dtype), w3_ref[...],
                preferred_element_type=jnp.float32)
    h = jnp.maximum(h + b3_ref[...], 0.0)

    # fc4 + Sigmoid, emitted lane-dense:
    #   z[0, t] = sum_k w4[k] * h[t, k]
    # Same dimension_numbers pl.dot(w4r, h, trans_b=True) would use; the MXU
    # consumes h's contracting axis directly (no separate vxpose observed).
    z = lax.dot_general(w4r_ref[...], h.astype(mm_dtype),
                        dimension_numbers=(((1,), (1,)), ((), ())),
                        preferred_element_type=jnp.float32)       # [1, tb]
    o_ref[...] = jax.nn.sigmoid(z + b4_ref[...]).astype(o_ref.dtype)


# ----------------------------------------------------------------------------- tiling
_TB_CAP = 2048  # rows per grid step


def _choose_tiling(B):
    """Return (B_pad, tb): padded batch (multiple of 128) and batch tile.

    * Padded batch fits in one tile (<= _TB_CAP): single grid step — the
      grid is just a serial loop on v5e/v6e, so fewer steps = less per-step
      overhead and better MXU pass efficiency.
    * Larger batches: fixed 2048-row tiles, with the padded batch rounded so
      the step count is even (balanced split across v7x's 2 TensorCores).
    """
    B_pad = ((B + 127) // 128) * 128
    if B_pad <= _TB_CAP:
        return B_pad, B_pad
    chunk = 2 * _TB_CAP
    B_pad = ((B + chunk - 1) // chunk) * chunk
    return B_pad, _TB_CAP


def _replicated(arr):
    # Full-array block, constant index map (fetched once, resident across tiles).
    return pl.BlockSpec(arr.shape, lambda i: (0, 0))


# ----------------------------------------------------------------------------- forward
@jax.jit
def _forward_impl(x, w1m, b1, w2m, b2, w3m, b3, w4r, b4s):
    B, D = x.shape
    B_pad, tb = _choose_tiling(B)
    if B_pad != B:
        x = jnp.pad(x, ((0, B_pad - B), (0, 0)))   # zero rows, sliced off below

    out_row = pl.pallas_call(
        fraud_mlp_kernel,
        out_shape=jax.ShapeDtypeStruct((1, B_pad), jnp.float32),
        grid_spec=pltpu.PrefetchScalarGridSpec(
            num_scalar_prefetch=0,
            grid=(B_pad // tb,),
            in_specs=[
                pl.BlockSpec((tb, D), lambda i: (i, 0)),   # x batch tile (f32)
                _replicated(w1m), _replicated(b1),
                _replicated(w2m), _replicated(b2),
                _replicated(w3m), _replicated(b3),
                _replicated(w4r), _replicated(b4s),
            ],
            out_specs=pl.BlockSpec((1, tb), lambda i: (0, i)),   # lane-dense row
        ),
        compiler_params=pltpu.CompilerParams(
            dimension_semantics=("parallel",)),
    )(x, w1m, b1, w2m, b2, w3m, b3, w4r, b4s)

    # [1, B_pad] lane-dense row -> drop padding -> [B, 1] column.
    return out_row[:, :B].reshape(B, 1)


def prepare_params(params, *, use_bf16=True):
    """One-time parameter prep (casts / reshapes hoisted out of the forward path)."""
    w1, b1, w2, b2, w3, b3, w4, b4 = params
    mm_dtype = jnp.bfloat16 if use_bf16 else jnp.float32
    w1m, w2m, w3m = (w.astype(mm_dtype) for w in (w1, w2, w3))
    w4r = w4.reshape(1, -1).astype(mm_dtype)      # [1, 32]   (w4 stored [32, 1])
    b4s = b4.reshape(1, 1).astype(jnp.float32)    # scalar bias for the output row
    b1f, b2f, b3f = (b.astype(jnp.float32) for b in (b1, b2, b3))
    return (w1m, b1f, w2m, b2f, w3m, b3f, w4r, b4s)


def fraud_detection_forward(x, prepped_params):
    """x: [B, input_dim] float32 -> [B, 1] float32 sigmoid probabilities."""
    return _forward_impl(x, *prepped_params)


def init_params(key, input_dim):
    """Deterministic synthetic params matching nn.Linear shapes.
    Stored transposed ([in, out]) relative to PyTorch's [out, in]."""
    dims = [(input_dim, 128), (128, 64), (64, 32), (32, 1)]
    params = []
    for (din, dout) in dims:
        key, kw, kb = jax.random.split(key, 3)
        bound = 1.0 / jnp.sqrt(din)
        w = jax.random.uniform(kw, (din, dout), jnp.float32, -bound, bound)
        b = jax.random.uniform(kb, (1, dout), jnp.float32, -bound, bound)
        params += [w, b]
    return params


def _reference(x, params):
    w1, b1, w2, b2, w3, b3, w4, b4 = params
    h = jnp.maximum(x @ w1 + b1, 0.0)
    h = jnp.maximum(h @ w2 + b2, 0.0)
    h = jnp.maximum(h @ w3 + b3, 0.0)
    return jax.nn.sigmoid(h @ w4 + b4)


# TODO(synk): StandardScaler preprocessing and the training loop from the original
# script are data-pipeline / optimizer code, not part of the module forward pass.
if __name__ == "__main__":
    key = jax.random.PRNGKey(0)
    input_dim = 32   # stand-in for X_train.shape[1]
    batch = 16       # small demo batch (padded to 128 rows, single grid step)

    key, kx = jax.random.split(key)
    x = jax.random.normal(kx, (batch, input_dim), jnp.float32)
    params = init_params(key, input_dim)

    prepped_bf16 = prepare_params(params, use_bf16=True)   # fast MXU path
    prepped_f32 = prepare_params(params, use_bf16=False)   # exact-scoring path

    out = jax.block_until_ready(fraud_detection_forward(x, prepped_bf16))
    out_f32 = jax.block_until_ready(fraud_detection_forward(x, prepped_f32))

    ref = _reference(x, params)
    assert out.shape == (batch, 1)
    assert jnp.allclose(out_f32, ref, atol=1e-5), "f32 kernel mismatch vs reference"
    assert jnp.allclose(out, ref, atol=2e-2), "bf16 kernel mismatch vs reference"

    # Ragged batch (exercises the pad-to-128 path instead of a whole-batch tile).
    key, kx2 = jax.random.split(key)
    x2 = jax.random.normal(kx2, (200, input_dim), jnp.float32)
    out2 = jax.block_until_ready(fraud_detection_forward(x2, prepped_f32))
    assert out2.shape == (200, 1)
    assert jnp.allclose(out2, _reference(x2, params), atol=1e-5), \
        "padded-batch kernel mismatch vs reference"

    print("KERNEL_OK")
</pallas_src>

<mosaic_0001>
module attributes {stable_mosaic.version = 11 : i64} {
  func.func @fraud_mlp_kernel(%arg0: i32, %arg1: memref<128x32xf32, #tpu.memory_space<vmem>>, %arg2: memref<32x128xbf16, #tpu.memory_space<vmem>>, %arg3: memref<1x128xf32, #tpu.memory_space<vmem>>, %arg4: memref<128x64xbf16, #tpu.memory_space<vmem>>, %arg5: memref<1x64xf32, #tpu.memory_space<vmem>>, %arg6: memref<64x32xbf16, #tpu.memory_space<vmem>>, %arg7: memref<1x32xf32, #tpu.memory_space<vmem>>, %arg8: memref<1x32xbf16, #tpu.memory_space<vmem>>, %arg9: memref<1x1xf32, #tpu.memory_space<vmem>>, %arg10: memref<1x128xf32, #tpu.memory_space<vmem>>) attributes {dimension_semantics = [#tpu.dimension_semantics<parallel>], iteration_bounds = array<i64: 1>, scalar_prefetch = 0 : i64, scratch_operands = 0 : i64, tpu.core_type = #tpu.core_type<tc>, window_params = [{transform_indices = @transform_0, window_bounds = array<i64: 128, 32>}, {pipeline_mode = #tpu.pipeline_mode<synchronous>, transform_indices = @transform_1, window_bounds = array<i64: 32, 128>}, {pipeline_mode = #tpu.pipeline_mode<synchronous>, transform_indices = @transform_2, window_bounds = array<i64: 1, 128>}, {pipeline_mode = #tpu.pipeline_mode<synchronous>, transform_indices = @transform_3, window_bounds = array<i64: 128, 64>}, {pipeline_mode = #tpu.pipeline_mode<synchronous>, transform_indices = @transform_4, window_bounds = array<i64: 1, 64>}, {pipeline_mode = #tpu.pipeline_mode<synchronous>, transform_indices = @transform_5, window_bounds = array<i64: 64, 32>}, {pipeline_mode = #tpu.pipeline_mode<synchronous>, transform_indices = @transform_6, window_bounds = array<i64: 1, 32>}, {pipeline_mode = #tpu.pipeline_mode<synchronous>, transform_indices = @transform_7, window_bounds = array<i64: 1, 32>}, {pipeline_mode = #tpu.pipeline_mode<synchronous>, transform_indices = @transform_8, window_bounds = array<i64: 1, 1>}, {transform_indices = @transform_9, window_bounds = array<i64: 1, 128>}]} {
    %c0 = arith.constant 0 : index
    %c0_0 = arith.constant 0 : index
    %0 = vector.load %arg1[%c0, %c0_0] : memref<128x32xf32, #tpu.memory_space<vmem>>, vector<128x32xf32>
    %1 = arith.truncf %0 : vector<128x32xf32> to vector<128x32xbf16>
    %c0_1 = arith.constant 0 : index
    %c0_2 = arith.constant 0 : index
    %2 = vector.load %arg2[%c0_1, %c0_2] : memref<32x128xbf16, #tpu.memory_space<vmem>>, vector<32x128xbf16>
    %cst = arith.constant dense<0.000000e+00> : vector<128x128xf32>
    %3 = tpu.matmul %1, %2, %cst {dimension_numbers = #tpu.dot_dimension_numbers<[1], [0], [0], [1], [0, 0, 1, 1], [], []>} : vector<128x32xbf16>, vector<32x128xbf16>, vector<128x128xf32> -> vector<128x128xf32>
    %c0_3 = arith.constant 0 : index
    %c0_4 = arith.constant 0 : index
    %4 = vector.load %arg3[%c0_3, %c0_4] : memref<1x128xf32, #tpu.memory_space<vmem>>, vector<1x128xf32>
    %5 = vector.broadcast %4 : vector<1x128xf32> to vector<128x128xf32>
    %6 = arith.addf %3, %5 : vector<128x128xf32>
    %cst_5 = arith.constant 0.000000e+00 : f32
    %7 = vector.broadcast %cst_5 : f32 to vector<128x128xf32>
    %8 = arith.maximumf %6, %7 : vector<128x128xf32>
    %9 = arith.truncf %8 : vector<128x128xf32> to vector<128x128xbf16>
    %c0_6 = arith.constant 0 : index
    %c0_7 = arith.constant 0 : index
    %10 = vector.load %arg4[%c0_6, %c0_7] : memref<128x64xbf16, #tpu.memory_space<vmem>>, vector<128x64xbf16>
    %cst_8 = arith.constant dense<0.000000e+00> : vector<128x64xf32>
    %11 = tpu.matmul %9, %10, %cst_8 {dimension_numbers = #tpu.dot_dimension_numbers<[1], [0], [0], [1], [0, 0, 1, 1], [], []>} : vector<128x128xbf16>, vector<128x64xbf16>, vector<128x64xf32> -> vector<128x64xf32>
    %c0_9 = arith.constant 0 : index
    %c0_10 = arith.constant 0 : index
    %12 = vector.load %arg5[%c0_9, %c0_10] : memref<1x64xf32, #tpu.memory_space<vmem>>, vector<1x64xf32>
    %13 = vector.broadcast %12 : vector<1x64xf32> to vector<128x64xf32>
    %14 = arith.addf %11, %13 : vector<128x64xf32>
    %cst_11 = arith.constant 0.000000e+00 : f32
    %15 = vector.broadcast %cst_11 : f32 to vector<128x64xf32>
    %16 = arith.maximumf %14, %15 : vector<128x64xf32>
    %17 = arith.truncf %16 : vector<128x64xf32> to vector<128x64xbf16>
    %c0_12 = arith.constant 0 : index
    %c0_13 = arith.constant 0 : index
    %18 = vector.load %arg6[%c0_12, %c0_13] : memref<64x32xbf16, #tpu.memory_space<vmem>>, vector<64x32xbf16>
    %cst_14 = arith.constant dense<0.000000e+00> : vector<128x32xf32>
    %19 = tpu.matmul %17, %18, %cst_14 {dimension_numbers = #tpu.dot_dimension_numbers<[1], [0], [0], [1], [0, 0, 1, 1], [], []>} : vector<128x64xbf16>, vector<64x32xbf16>, vector<128x32xf32> -> vector<128x32xf32>
    %c0_15 = arith.constant 0 : index
    %c0_16 = arith.constant 0 : index
    %20 = vector.load %arg7[%c0_15, %c0_16] : memref<1x32xf32, #tpu.memory_space<vmem>>, vector<1x32xf32>
    %21 = vector.broadcast %20 : vector<1x32xf32> to vector<128x32xf32>
    %22 = arith.addf %19, %21 : vector<128x32xf32>
    %cst_17 = arith.constant 0.000000e+00 : f32
    %23 = vector.broadcast %cst_17 : f32 to vector<128x32xf32>
    %24 = arith.maximumf %22, %23 : vector<128x32xf32>
    %c0_18 = arith.constant 0 : index
    %c0_19 = arith.constant 0 : index
    %25 = vector.load %arg8[%c0_18, %c0_19] : memref<1x32xbf16, #tpu.memory_space<vmem>>, vector<1x32xbf16>
    %26 = arith.truncf %24 : vector<128x32xf32> to vector<128x32xbf16>
    %cst_20 = arith.constant dense<0.000000e+00> : vector<1x128xf32>
    %27 = tpu.matmul %25, %26, %cst_20 {dimension_numbers = #tpu.dot_dimension_numbers<[1], [1], [0], [0], [0, 0, 1, 0], [], []>} : vector<1x32xbf16>, vector<128x32xbf16>, vector<1x128xf32> -> vector<1x128xf32>
    %c0_21 = arith.constant 0 : index
    %c0_22 = arith.constant 0 : index
    %28 = vector.load %arg9[%c0_21, %c0_22] : memref<1x1xf32, #tpu.memory_space<vmem>>, vector<1x1xf32>
    %29 = vector.broadcast %28 : vector<1x1xf32> to vector<1x128xf32>
    %30 = arith.addf %27, %29 : vector<1x128xf32>
    %31 = arith.negf %30 : vector<1x128xf32>
    %32 = math.exp %31 : vector<1x128xf32>
    %cst_23 = arith.constant 1.000000e+00 : f32
    %33 = vector.broadcast %cst_23 : f32 to vector<1x128xf32>
    %34 = arith.addf %33, %32 : vector<1x128xf32>
    %35 = arith.divf %33, %34 : vector<1x128xf32>
    %c0_24 = arith.constant 0 : index
    %c0_25 = arith.constant 0 : index
    %36 = vector.load %arg10[%c0_24, %c0_25] : memref<1x128xf32, #tpu.memory_space<vmem>>, vector<1x128xf32>
    tpu.vector_store %arg10[%c0_24, %c0_25], %35 {strides = array<i32>} : memref<1x128xf32, #tpu.memory_space<vmem>>, vector<1x128xf32>,
    return
  }
  func.func @transform_0(%arg0: i32) -> (i32, i32) {
    %c0_i32 = arith.constant 0 : i32
    %c0_i32_0 = arith.constant 0 : i32
    return %arg0, %c0_i32 : i32, i32
  }
  func.func @transform_1(%arg0: i32) -> (i32, i32) {
    %c0_i32 = arith.constant 0 : i32
    %c0_i32_0 = arith.constant 0 : i32
    %c0_i32_1 = arith.constant 0 : i32
    return %c0_i32, %c0_i32_0 : i32, i32
  }
  func.func @transform_2(%arg0: i32) -> (i32, i32) {
    %c0_i32 = arith.constant 0 : i32
    %c0_i32_0 = arith.constant 0 : i32
    %c0_i32_1 = arith.constant 0 : i32
    return %c0_i32, %c0_i32_0 : i32, i32
  }
  func.func @transform_3(%arg0: i32) -> (i32, i32) {
    %c0_i32 = arith.constant 0 : i32
    %c0_i32_0 = arith.constant 0 : i32
    %c0_i32_1 = arith.constant 0 : i32
    return %c0_i32, %c0_i32_0 : i32, i32
  }
  func.func @transform_4(%arg0: i32) -> (i32, i32) {
    %c0_i32 = arith.constant 0 : i32
    %c0_i32_0 = arith.constant 0 : i32
    %c0_i32_1 = arith.constant 0 : i32
    return %c0_i32, %c0_i32_0 : i32, i32
  }
  func.func @transform_5(%arg0: i32) -> (i32, i32) {
    %c0_i32 = arith.constant 0 : i32
    %c0_i32_0 = arith.constant 0 : i32
    %c0_i32_1 = arith.constant 0 : i32
    return %c0_i32, %c0_i32_0 : i32, i32
  }
  func.func @transform_6(%arg0: i32) -> (i32, i32) {
    %c0_i32 = arith.constant 0 : i32
    %c0_i32_0 = arith.constant 0 : i32
    %c0_i32_1 = arith.constant 0 : i32
    return %c0_i32, %c0_i32_0 : i32, i32
  }
  func.func @transform_7(%arg0: i32) -> (i32, i32) {
    %c0_i32 = arith.constant 0 : i32
    %c0_i32_0 = arith.constant 0 : i32
    %c0_i32_1 = arith.constant 0 : i32
    return %c0_i32, %c0_i32_0 : i32, i32
  }
  func.func @transform_8(%arg0: i32) -> (i32, i32) {
    %c0_i32 = arith.constant 0 : i32
    %c0_i32_0 = arith.constant 0 : i32
    %c0_i32_1 = arith.constant 0 : i32
    return %c0_i32, %c0_i32_0 : i32, i32
  }
  func.func @transform_9(%arg0: i32) -> (i32, i32) {
    %c0_i32 = arith.constant 0 : i32
    %c0_i32_0 = arith.constant 0 : i32
    return %c0_i32, %arg0 : i32, i32
  }
}

</mosaic_0001>

<llo_original>
// kernel: _forward_impl.1
$region0: #{_forward_impl.1}
  #allocation0 [shape = 'u32[]', space=smem, size = 0x4, offset = 0x4, fixed_abs, tag = 'smem constant byte address 0x4 - core index']
  #allocation1 [shape = 'u32[144,128]{1,0:T(1,128)}', space=vmem, size = 0x12000, scoped, tag = 'internal scratch']
  #allocation2 [shape = 'f32[1,1]{1,0:T(1,128)S(1)}', space=vmem, size = 0x200, scoped, tag = 'scoped memory for _forward_impl.1']
  %s0 = inlined_call_operand.vmem [shape: f32[128,32], index: 0, kind: input, shape index: {}]
  %s1 = inlined_call_operand.vmem [shape: bf16[32,128], index: 1, kind: input, shape index: {}]
  %s2 = inlined_call_operand.vmem [shape: f32[1,128], index: 2, kind: input, shape index: {}]
  %s3 = inlined_call_operand.vmem [shape: bf16[128,64], index: 3, kind: input, shape index: {}]
  %s4 = inlined_call_operand.vmem [shape: f32[1,64], index: 4, kind: input, shape index: {}]
  %s5 = inlined_call_operand.vmem [shape: bf16[64,32], index: 5, kind: input, shape index: {}]
  %s6 = inlined_call_operand.vmem [shape: f32[1,32], index: 6, kind: input, shape index: {}]
  %s7 = inlined_call_operand.vmem [shape: bf16[1,32], index: 7, kind: input, shape index: {}]
  %s8 = inlined_call_operand.<no memory space> [shape: f32[1,1], index: 8, kind: input, shape index: {}]
  %s9 = inlined_call_operand.vmem [shape: f32[1,128], index: 9, kind: output, shape index: {}]
  %s10 = sld [smem:[#allocation0]]
  $region46: #{_forward_impl.1} parent=0
    _
  %s12 = ssub.s32 1, %s10
  %s13 = scalar_select 0, %s12, %s10
  %v14 = vstv %s8
  %15 = vst [vmem:[#allocation2] sm:$0x1] %v14
  // Predicated region
  $region2: #{_forward_impl.1} parent=0 // pred_check
    _
  $region3: #{_forward_impl.1} parent=0 // pred_check_branch
    %17 = sbr.rel (0) target = $region5
  $region4: #{_forward_impl.1} parent=0 // pred_region
    _
  $region5: #{_forward_impl.1} parent=0 // pred_fallthru
    _
  // Predicated region
  $region6: #{_forward_impl.1} parent=0 // pred_check
    _
  $region7: #{_forward_impl.1} parent=0 // pred_check_branch
    %19 = sbr.rel (0) target = $region9
  $region8: #{_forward_impl.1} parent=0 // pred_region
    _
  $region9: #{_forward_impl.1} parent=0 // pred_fallthru
    _
  // Predicated region
  $region10: #{_forward_impl.1} parent=0 // pred_check
    _
  $region11: #{_forward_impl.1} parent=0 // pred_check_branch
    %21 = sbr.rel (0) target = $region13
  $region12: #{_forward_impl.1} parent=0 // pred_region
    _
  $region13: #{_forward_impl.1} parent=0 // pred_fallthru
    _
  // Predicated region
  $region14: #{_forward_impl.1} parent=0 // pred_check
    _
  $region15: #{_forward_impl.1} parent=0 // pred_check_branch
    %23 = sbr.rel (0) target = $region17
  $region16: #{_forward_impl.1} parent=0 // pred_region
    _
  $region17: #{_forward_impl.1} parent=0 // pred_fallthru
    _
  // Predicated region
  $region18: #{_forward_impl.1} parent=0 // pred_check
    _
  $region19: #{_forward_impl.1} parent=0 // pred_check_branch
    %25 = sbr.rel (0) target = $region21
  $region20: #{_forward_impl.1} parent=0 // pred_region
    _
  $region21: #{_forward_impl.1} parent=0 // pred_fallthru
    _
  // Predicated region
  $region22: #{_forward_impl.1} parent=0 // pred_check
    _
  $region23: #{_forward_impl.1} parent=0 // pred_check_branch
    %27 = sbr.rel (0) target = $region25
  $region24: #{_forward_impl.1} parent=0 // pred_region
    _
  $region25: #{_forward_impl.1} parent=0 // pred_fallthru
    _
  // Predicated region
  $region26: #{_forward_impl.1} parent=0 // pred_check
    _
  $region27: #{_forward_impl.1} parent=0 // pred_check_branch
    %29 = sbr.rel (0) target = $region29
  $region28: #{_forward_impl.1} parent=0 // pred_region
    _
  $region29: #{_forward_impl.1} parent=0 // pred_fallthru
    _
  // Predicated region
  $region30: #{_forward_impl.1} parent=0 // pred_check
    _
  $region31: #{_forward_impl.1} parent=0 // pred_check_branch
    %31 = sbr.rel (0) target = $region33
  $region32: #{_forward_impl.1} parent=0 // pred_region
    _
  $region33: #{_forward_impl.1} parent=0 // pred_fallthru
    _
  // Predicated region
  $region34: #{_forward_impl.1} parent=0 // pred_check
    _
  $region35: #{_forward_impl.1} parent=0 // pred_check_branch
    %33 = sbr.rel (0) target = $region37
  $region36: #{_forward_impl.1} parent=0 // pred_region
    _
  $region37: #{_forward_impl.1} parent=0 // pred_fallthru
    _
  %v35 = vld [vmem:[%s0] sm:$0xff]
  %v36 = vld [vmem:[%s0 + $0x8] sm:$0xff]
  %v37 = vld [vmem:[%s0 + $0x10] sm:$0xff]
  %v38 = vld [vmem:[%s0 + $0x18] sm:$0xff]
  %v39 = vld [vmem:[%s0 + $0x20] sm:$0xff]
  %v40 = vld [vmem:[%s0 + $0x28] sm:$0xff]
  %v41 = vld [vmem:[%s0 + $0x30] sm:$0xff]
  %v42 = vld [vmem:[%s0 + $0x38] sm:$0xff]
  %v43 = vld [vmem:[%s0 + $0x40] sm:$0xff]
  %v44 = vld [vmem:[%s0 + $0x48] sm:$0xff]
  %v45 = vld [vmem:[%s0 + $0x50] sm:$0xff]
  %v46 = vld [vmem:[%s0 + $0x58] sm:$0xff]
  %v47 = vld [vmem:[%s0 + $0x60] sm:$0xff]
  %v48 = vld [vmem:[%s0 + $0x68] sm:$0xff]
  %v49 = vld [vmem:[%s0 + $0x70] sm:$0xff]
  %v50 = vld [vmem:[%s0 + $0x78] sm:$0xff]
  %v51 = vpack.c.bf16 %v36, %v35
  %v52 = vpack.c.bf16 %v38, %v37
  %v53 = vpack.c.bf16 %v40, %v39
  %v54 = vpack.c.bf16 %v42, %v41
  %v55 = vpack.c.bf16 %v44, %v43
  %v56 = vpack.c.bf16 %v46, %v45
  %v57 = vpack.c.bf16 %v48, %v47
  %v58 = vpack.c.bf16 %v50, %v49
  %v59 = vld [vmem:[%s1] sm:$0xf]
  %v60 = vld [vmem:[%s1 + $0x4] sm:$0xf]
  %v61 = vld [vmem:[%s1 + $0x8] sm:$0xf]
  %v62 = vld [vmem:[%s1 + $0xc] sm:$0xf]
  %v63 = vld [vmem:[%s2] sm:$0x1]
  %v65 = vlaneseq
  %v66 = vshrl.u32 %v65, 7
  %v67 = vsub.s32 0, %v66
  %v68 = vrot.slane %v63, %v67
  %v74 = vunpack.c.l.b16 %v59
  %v75 = vunpack.c.l.b16 %v60
  %v76 = vunpack.c.l.b16 %v61
  %v77 = vunpack.c.l.b16 %v62
  %v78 = vpack.c.b16 %v75, %v74
  %v79 = vpack.c.b16 %v77, %v76
  %vm82 = vcmask 261120
  %v84 = vsel %vm82, %v51, 0
  %v87 = vsel %vm82, %v52, 0
  %v90 = vsel %vm82, %v53, 0
  %v93 = vsel %vm82, %v54, 0
  %v96 = vsel %vm82, %v55, 0
  %v99 = vsel %vm82, %v56, 0
  %v102 = vsel %vm82, %v57, 0
  %v105 = vsel %vm82, %v58, 0
  %107 = vmatprep.subr.bf16.mxu0 0
  %108 = vmatpush1.bf16.msra.mxu0 %v78
  %109 = vmatprep.subr.bf16.mxu0 0
  %110 = vmatpush1.bf16.msra.mxu0 %v79
  %111 = vmatprep.subr.bf16.mxu0 0
  %112 = vmatpush1.bf16.msra.mxu0 0
  %113 = vmatprep.subr.bf16.mxu0 0
  %114 = vmatpush1.bf16.msra.mxu0 0
  %115 = vmatprep.subr.bf16.mxu0 0
  %116 = vmatpush1.bf16.msra.mxu0 0
  %117 = vmatprep.subr.bf16.mxu0 0
  %118 = vmatpush1.bf16.msra.mxu0 0
  %119 = vmatprep.subr.bf16.mxu0 0
  %120 = vmatpush1.bf16.msra.mxu0 0
  %121 = vmatprep.subr.bf16.mxu0 0
  %122 = vmatpush1.bf16.msra.mxu0 0
  %123 = vmatprep.subr.bf16.mxu0 0
  %124 = vmatpush1.bf16.msra.mxu0 0
  %125 = vmatprep.subr.bf16.mxu0 0
  %126 = vmatpush1.bf16.msra.mxu0 0
  %127 = vmatprep.subr.bf16.mxu0 0
  %128 = vmatpush1.bf16.msra.mxu0 0
  %129 = vmatprep.subr.bf16.mxu0 0
  %130 = vmatpush1.bf16.msra.mxu0 0
  %131 = vmatprep.subr.bf16.mxu0 0
  %132 = vmatpush1.bf16.msra.mxu0 0
  %133 = vmatprep.subr.bf16.mxu0 0
  %134 = vmatpush1.bf16.msra.mxu0 0
  %135 = vmatprep.subr.bf16.mxu0 0
  %136 = vmatpush1.bf16.msra.mxu0 0
  %137 = vmatprep.subr.bf16.mxu0 0
  %138 = vmatpush1.bf16.msra.mxu0 0
  %139 = vmatprep.mubr.bf16.mxu0 0
  %140 = vmatmul.mubr.bf16.gmra.mrb[0].mxu0 %v84
  %v141 = vpop.f32.mrb[0].mxu0
  %v142 = vadd.f32 %v68, %v141
  %v143 = vpop.f32.mrb[0].mxu0
  %v144 = vpop.f32.mrb[0].mxu0
  %v145 = vadd.f32 %v68, %v144
  %v146 = vpop.f32.mrb[0].mxu0
  %147 = vmatprep.mubr.bf16.mxu0 0
  %148 = vmatmul.mubr.bf16.gmra.mrb[0].mxu0 %v87
  %v149 = vpop.f32.mrb[0].mxu0
  %v150 = vadd.f32 %v68, %v149
  %v151 = vpop.f32.mrb[0].mxu0
  %v152 = vpop.f32.mrb[0].mxu0
  %v153 = vadd.f32 %v68, %v152
  %v154 = vpop.f32.mrb[0].mxu0
  %155 = vmatprep.mubr.bf16.mxu0 0
  %156 = vmatmul.mubr.bf16.gmra.mrb[0].mxu0 %v90
  %v157 = vpop.f32.mrb[0].mxu0
  %v158 = vadd.f32 %v68, %v157
  %v159 = vpop.f32.mrb[0].mxu0
  %v160 = vpop.f32.mrb[0].mxu0
  %v161 = vadd.f32 %v68, %v160
  %v162 = vpop.f32.mrb[0].mxu0
  %163 = vmatprep.mubr.bf16.mxu0 0
  %164 = vmatmul.mubr.bf16.gmra.mrb[0].mxu0 %v93
  %v165 = vpop.f32.mrb[0].mxu0
  %v166 = vadd.f32 %v68, %v165
  %v167 = vpop.f32.mrb[0].mxu0
  %v168 = vpop.f32.mrb[0].mxu0
  %v169 = vadd.f32 %v68, %v168
  %v170 = vpop.f32.mrb[0].mxu0
  %171 = vmatprep.mubr.bf16.mxu0 0
  %172 = vmatmul.mubr.bf16.gmra.mrb[0].mxu0 %v96
  %v173 = vpop.f32.mrb[0].mxu0
  %v174 = vadd.f32 %v68, %v173
  %v175 = vpop.f32.mrb[0].mxu0
  %v176 = vpop.f32.mrb[0].mxu0
  %v177 = vadd.f32 %v68, %v176
  %v178 = vpop.f32.mrb[0].mxu0
  %179 = vmatprep.mubr.bf16.mxu0 0
  %180 = vmatmul.mubr.bf16.gmra.mrb[0].mxu0 %v99
  %v181 = vpop.f32.mrb[0].mxu0
  %v182 = vadd.f32 %v68, %v181
  %v183 = vpop.f32.mrb[0].mxu0
  %v184 = vpop.f32.mrb[0].mxu0
  %v185 = vadd.f32 %v68, %v184
  %v186 = vpop.f32.mrb[0].mxu0
  %187 = vmatprep.mubr.bf16.mxu0 0
  %188 = vmatmul.mubr.bf16.gmra.mrb[0].mxu0 %v102
  %v189 = vpop.f32.mrb[0].mxu0
  %v190 = vadd.f32 %v68, %v189
  %v191 = vpop.f32.mrb[0].mxu0
  %v192 = vpop.f32.mrb[0].mxu0
  %v193 = vadd.f32 %v68, %v192
  %v194 = vpop.f32.mrb[0].mxu0
  %195 = vmatprep.mubr.bf16.mxu0 0
  %196 = vmatmul.mubr.bf16.gmra.mrb[0].mxu0 %v105
  %v197 = vpop.f32.mrb[0].mxu0
  %v198 = vadd.f32 %v68, %v197
  %v199 = vpop.f32.mrb[0].mxu0
  %v200 = vpop.f32.mrb[0].mxu0
  %v201 = vadd.f32 %v68, %v200
  %v202 = vpop.f32.mrb[0].mxu0
  %203 = vdwg.mxu0
  %v204 = vmax.f32 %v142, 0.0
  %v205 = vmax.f32 %v145, 0.0
  %v206 = vmax.f32 %v150, 0.0
  %v207 = vmax.f32 %v153, 0.0
  %v208 = vmax.f32 %v158, 0.0
  %v209 = vmax.f32 %v161, 0.0
  %v210 = vmax.f32 %v166, 0.0
  %v211 = vmax.f32 %v169, 0.0
  %v212 = vmax.f32 %v174, 0.0
  %v213 = vmax.f32 %v177, 0.0
  %v214 = vmax.f32 %v182, 0.0
  %v215 = vmax.f32 %v185, 0.0
  %v216 = vmax.f32 %v190, 0.0
  %v217 = vmax.f32 %v193, 0.0
  %v218 = vmax.f32 %v198, 0.0
  %v219 = vmax.f32 %v201, 0.0
  %v220 = vpack.c.bf16 %v205, %v204
  %v221 = vpack.c.bf16 %v207, %v206
  %v222 = vpack.c.bf16 %v209, %v208
  %v223 = vpack.c.bf16 %v211, %v210
  %v224 = vpack.c.bf16 %v213, %v212
  %v225 = vpack.c.bf16 %v215, %v214
  %v226 = vpack.c.bf16 %v217, %v216
  %v227 = vpack.c.bf16 %v219, %v218
  %v228 = vld [vmem:[%s3] sm:$0xf]
  %v229 = vld [vmem:[%s3 + $0x4] sm:$0xf]
  %v230 = vld [vmem:[%s3 + $0x8] sm:$0xf]
  %v231 = vld [vmem:[%s3 + $0xc] sm:$0xf]
  %v232 = vld [vmem:[%s3 + $0x10] sm:$0xf]
  %v233 = vld [vmem:[%s3 + $0x14] sm:$0xf]
  %v234 = vld [vmem:[%s3 + $0x18] sm:$0xf]
  %v235 = vld [vmem:[%s3 + $0x1c] sm:$0xf]
  %v236 = vld [vmem:[%s3 + $0x20] sm:$0xf]
  %v237 = vld [vmem:[%s3 + $0x24] sm:$0xf]
  %v238 = vld [vmem:[%s3 + $0x28] sm:$0xf]
  %v239 = vld [vmem:[%s3 + $0x2c] sm:$0xf]
  %v240 = vld [vmem:[%s3 + $0x30] sm:$0xf]
  %v241 = vld [vmem:[%s3 + $0x34] sm:$0xf]
  %v242 = vld [vmem:[%s3 + $0x38] sm:$0xf]
  %v243 = vld [vmem:[%s3 + $0x3c] sm:$0xf]
  %v244 = vld [vmem:[%s4] sm:$0x1]
  %v246 = vlaneseq
  %v247 = vshrl.u32 %v246, 7
  %v248 = vsub.s32 0, %v247
  %v249 = vrot.slane %v244, %v248
  %v267 = vunpack.c.l.b16 %v228
  %v268 = vunpack.c.l.b16 %v229
  %v269 = vunpack.c.l.b16 %v230
  %v270 = vunpack.c.l.b16 %v231
  %v271 = vunpack.c.l.b16 %v232
  %v272 = vunpack.c.l.b16 %v233
  %v273 = vunpack.c.l.b16 %v234
  %v274 = vunpack.c.l.b16 %v235
  %v275 = vunpack.c.l.b16 %v236
  %v276 = vunpack.c.l.b16 %v237
  %v277 = vunpack.c.l.b16 %v238
  %v278 = vunpack.c.l.b16 %v239
  %v279 = vunpack.c.l.b16 %v240
  %v280 = vunpack.c.l.b16 %v241
  %v281 = vunpack.c.l.b16 %v242
  %v282 = vunpack.c.l.b16 %v243
  %v283 = vpack.c.b16 %v268, %v267
  %v284 = vpack.c.b16 %v270, %v269
  %v285 = vpack.c.b16 %v272, %v271
  %v286 = vpack.c.b16 %v274, %v273
  %v287 = vpack.c.b16 %v276, %v275
  %v288 = vpack.c.b16 %v278, %v277
  %v289 = vpack.c.b16 %v280, %v279
  %v290 = vpack.c.b16 %v282, %v281
  %299 = vmatprep.subr.bf16.mxu0 0
  %300 = vmatpush1.bf16.msra.mxu0 %v283
  %301 = vmatprep.subr.bf16.mxu0 0
  %302 = vmatpush1.bf16.msra.mxu0 %v284
  %303 = vmatprep.subr.bf16.mxu0 0
  %304 = vmatpush1.bf16.msra.mxu0 %v285
  %305 = vmatprep.subr.bf16.mxu0 0
  %306 = vmatpush1.bf16.msra.mxu0 %v286
  %307 = vmatprep.subr.bf16.mxu0 0
  %308 = vmatpush1.bf16.msra.mxu0 %v287
  %309 = vmatprep.subr.bf16.mxu0 0
  %310 = vmatpush1.bf16.msra.mxu0 %v288
  %311 = vmatprep.subr.bf16.mxu0 0
  %312 = vmatpush1.bf16.msra.mxu0 %v289
  %313 = vmatprep.subr.bf16.mxu0 0
  %314 = vmatpush1.bf16.msra.mxu0 %v290
  %315 = vmatprep.subr.bf16.mxu0 0
  %316 = vmatpush1.bf16.msra.mxu0 0
  %317 = vmatprep.subr.bf16.mxu0 0
  %318 = vmatpush1.bf16.msra.mxu0 0
  %319 = vmatprep.subr.bf16.mxu0 0
  %320 = vmatpush1.bf16.msra.mxu0 0
  %321 = vmatprep.subr.bf16.mxu0 0
  %322 = vmatpush1.bf16.msra.mxu0 0
  %323 = vmatprep.subr.bf16.mxu0 0
  %324 = vmatpush1.bf16.msra.mxu0 0
  %325 = vmatprep.subr.bf16.mxu0 0
  %326 = vmatpush1.bf16.msra.mxu0 0
  %327 = vmatprep.subr.bf16.mxu0 0
  %328 = vmatpush1.bf16.msra.mxu0 0
  %329 = vmatprep.subr.bf16.mxu0 0
  %330 = vmatpush1.bf16.msra.mxu0 0
  %331 = vmatprep.mubr.bf16.mxu0 0
  %332 = vmatmul.mubr.bf16.gmra.mrb[0].mxu0 %v220
  %v333 = vpop.f32.mrb[0].mxu0
  %v334 = vadd.f32 %v249, %v333
  %v335 = vpop.f32.mrb[0].mxu0
  %v336 = vpop.f32.mrb[0].mxu0
  %v337 = vadd.f32 %v249, %v336
  %v338 = vpop.f32.mrb[0].mxu0
  %339 = vmatprep.mubr.bf16.mxu0 0
  %340 = vmatmul.mubr.bf16.gmra.mrb[0].mxu0 %v221
  %v341 = vpop.f32.mrb[0].mxu0
  %v342 = vadd.f32 %v249, %v341
  %v343 = vpop.f32.mrb[0].mxu0
  %v344 = vpop.f32.mrb[0].mxu0
  %v345 = vadd.f32 %v249, %v344
  %v346 = vpop.f32.mrb[0].mxu0
  %347 = vmatprep.mubr.bf16.mxu0 0
  %348 = vmatmul.mubr.bf16.gmra.mrb[0].mxu0 %v222
  %v349 = vpop.f32.mrb[0].mxu0
  %v350 = vadd.f32 %v249, %v349
  %v351 = vpop.f32.mrb[0].mxu0
  %v352 = vpop.f32.mrb[0].mxu0
  %v353 = vadd.f32 %v249, %v352
  %v354 = vpop.f32.mrb[0].mxu0
  %355 = vmatprep.mubr.bf16.mxu0 0
  %356 = vmatmul.mubr.bf16.gmra.mrb[0].mxu0 %v223
  %v357 = vpop.f32.mrb[0].mxu0
  %v358 = vadd.f32 %v249, %v357
  %v359 = vpop.f32.mrb[0].mxu0
  %v360 = vpop.f32.mrb[0].mxu0
  %v361 = vadd.f32 %v249, %v360
  %v362 = vpop.f32.mrb[0].mxu0
  %363 = vmatprep.mubr.bf16.mxu0 0
  %364 = vmatmul.mubr.bf16.gmra.mrb[0].mxu0 %v224
  %v365 = vpop.f32.mrb[0].mxu0
  %v366 = vadd.f32 %v249, %v365
  %v367 = vpop.f32.mrb[0].mxu0
  %v368 = vpop.f32.mrb[0].mxu0
  %v369 = vadd.f32 %v249, %v368
  %v370 = vpop.f32.mrb[0].mxu0
  %371 = vmatprep.mubr.bf16.mxu0 0
  %372 = vmatmul.mubr.bf16.gmra.mrb[0].mxu0 %v225
  %v373 = vpop.f32.mrb[0].mxu0
  %v374 = vadd.f32 %v249, %v373
  %v375 = vpop.f32.mrb[0].mxu0
  %v376 = vpop.f32.mrb[0].mxu0
  %v377 = vadd.f32 %v249, %v376
  %v378 = vpop.f32.mrb[0].mxu0
  %379 = vmatprep.mubr.bf16.mxu0 0
  %380 = vmatmul.mubr.bf16.gmra.mrb[0].mxu0 %v226
  %v381 = vpop.f32.mrb[0].mxu0
  %v382 = vadd.f32 %v249, %v381
  %v383 = vpop.f32.mrb[0].mxu0
  %v384 = vpop.f32.mrb[0].mxu0
  %v385 = vadd.f32 %v249, %v384
  %v386 = vpop.f32.mrb[0].mxu0
  %387 = vmatprep.mubr.bf16.mxu0 0
  %388 = vmatmul.mubr.bf16.gmra.mrb[0].mxu0 %v227
  %v389 = vpop.f32.mrb[0].mxu0
  %v390 = vadd.f32 %v249, %v389
  %v391 = vpop.f32.mrb[0].mxu0
  %v392 = vpop.f32.mrb[0].mxu0
  %v393 = vadd.f32 %v249, %v392
  %v394 = vpop.f32.mrb[0].mxu0
  %395 = vdwg.mxu0
  %v396 = vmax.f32 %v334, 0.0
  %v397 = vmax.f32 %v337, 0.0
  %v398 = vmax.f32 %v342, 0.0
  %v399 = vmax.f32 %v345, 0.0
  %v400 = vmax.f32 %v350, 0.0
  %v401 = vmax.f32 %v353, 0.0
  %v402 = vmax.f32 %v358, 0.0
  %v403 = vmax.f32 %v361, 0.0
  %v404 = vmax.f32 %v366, 0.0
  %v405 = vmax.f32 %v369, 0.0
  %v406 = vmax.f32 %v374, 0.0
  %v407 = vmax.f32 %v377, 0.0
  %v408 = vmax.f32 %v382, 0.0
  %v409 = vmax.f32 %v385, 0.0
  %v410 = vmax.f32 %v390, 0.0
  %v411 = vmax.f32 %v393, 0.0
  %v412 = vpack.c.bf16 %v397, %v396
  %v413 = vpack.c.bf16 %v399, %v398
  %v414 = vpack.c.bf16 %v401, %v400
  %v415 = vpack.c.bf16 %v403, %v402
  %v416 = vpack.c.bf16 %v405, %v404
  %v417 = vpack.c.bf16 %v407, %v406
  %v418 = vpack.c.bf16 %v409, %v408
  %v419 = vpack.c.bf16 %v411, %v410
  %v420 = vld [vmem:[%s5] sm:$0xf]
  %v421 = vld [vmem:[%s5 + $0x4] sm:$0xf]
  %v422 = vld [vmem:[%s5 + $0x8] sm:$0xf]
  %v423 = vld [vmem:[%s5 + $0xc] sm:$0xf]
  %v424 = vld [vmem:[%s5 + $0x10] sm:$0xf]
  %v425 = vld [vmem:[%s5 + $0x14] sm:$0xf]
  %v426 = vld [vmem:[%s5 + $0x18] sm:$0xf]
  %v427 = vld [vmem:[%s5 + $0x1c] sm:$0xf]
  %v428 = vld [vmem:[%s6] sm:$0x1]
  %v430 = vlaneseq
  %v431 = vshrl.u32 %v430, 7
  %v432 = vsub.s32 0, %v431
  %v433 = vrot.slane %v428, %v432
  %v443 = vunpack.c.l.b16 %v420
  %v444 = vunpack.c.l.b16 %v421
  %v445 = vunpack.c.l.b16 %v422
  %v446 = vunpack.c.l.b16 %v423
  %v447 = vunpack.c.l.b16 %v424
  %v448 = vunpack.c.l.b16 %v425
  %v449 = vunpack.c.l.b16 %v426
  %v450 = vunpack.c.l.b16 %v427
  %v451 = vpack.c.b16 %v444, %v443
  %v452 = vpack.c.b16 %v446, %v445
  %v453 = vpack.c.b16 %v448, %v447
  %v454 = vpack.c.b16 %v450, %v449
  %vm459 = vcmask 523264
  %v461 = vsel %vm459, %v412, 0
  %v464 = vsel %vm459, %v413, 0
  %v467 = vsel %vm459, %v414, 0
  %v470 = vsel %vm459, %v415, 0
  %v473 = vsel %vm459, %v416, 0
  %v476 = vsel %vm459, %v417, 0
  %v479 = vsel %vm459, %v418, 0
  %v482 = vsel %vm459, %v419, 0
  %484 = vmatprep.subr.bf16.mxu0 0
  %485 = vmatpush1.bf16.msra.mxu0 %v451
  %486 = vmatprep.subr.bf16.mxu0 0
  %487 = vmatpush1.bf16.msra.mxu0 %v452
  %488 = vmatprep.subr.bf16.mxu0 0
  %489 = vmatpush1.bf16.msra.mxu0 %v453
  %490 = vmatprep.subr.bf16.mxu0 0
  %491 = vmatpush1.bf16.msra.mxu0 %v454
  %492 = vmatprep.subr.bf16.mxu0 0
  %493 = vmatpush1.bf16.msra.mxu0 0
  %494 = vmatprep.subr.bf16.mxu0 0
  %495 = vmatpush1.bf16.msra.mxu0 0
  %496 = vmatprep.subr.bf16.mxu0 0
  %497 = vmatpush1.bf16.msra.mxu0 0
  %498 = vmatprep.subr.bf16.mxu0 0
  %499 = vmatpush1.bf16.msra.mxu0 0
  %500 = vmatprep.subr.bf16.mxu0 0
  %501 = vmatpush1.bf16.msra.mxu0 0
  %502 = vmatprep.subr.bf16.mxu0 0
  %503 = vmatpush1.bf16.msra.mxu0 0
  %504 = vmatprep.subr.bf16.mxu0 0
  %505 = vmatpush1.bf16.msra.mxu0 0
  %506 = vmatprep.subr.bf16.mxu0 0
  %507 = vmatpush1.bf16.msra.mxu0 0
  %508 = vmatprep.subr.bf16.mxu0 0
  %509 = vmatpush1.bf16.msra.mxu0 0
  %510 = vmatprep.subr.bf16.mxu0 0
  %511 = vmatpush1.bf16.msra.mxu0 0
  %512 = vmatprep.subr.bf16.mxu0 0
  %513 = vmatpush1.bf16.msra.mxu0 0
  %514 = vmatprep.subr.bf16.mxu0 0
  %515 = vmatpush1.bf16.msra.mxu0 0
  %516 = vmatprep.mubr.bf16.mxu0 0
  %517 = vmatmul.mubr.bf16.gmra.mrb[0].mxu0 %v461
  %v518 = vpop.f32.mrb[0].mxu0
  %v519 = vadd.f32 %v433, %v518
  %v520 = vpop.f32.mrb[0].mxu0
  %v521 = vpop.f32.mrb[0].mxu0
  %v522 = vadd.f32 %v433, %v521
  %v523 = vpop.f32.mrb[0].mxu0
  %524 = vmatprep.mubr.bf16.mxu0 0
  %525 = vmatmul.mubr.bf16.gmra.mrb[0].mxu0 %v464
  %v526 = vpop.f32.mrb[0].mxu0
  %v527 = vadd.f32 %v433, %v526
  %v528 = vpop.f32.mrb[0].mxu0
  %v529 = vpop.f32.mrb[0].mxu0
  %v530 = vadd.f32 %v433, %v529
  %v531 = vpop.f32.mrb[0].mxu0
  %532 = vmatprep.mubr.bf16.mxu0 0
  %533 = vmatmul.mubr.bf16.gmra.mrb[0].mxu0 %v467
  %v534 = vpop.f32.mrb[0].mxu0
  %v535 = vadd.f32 %v433, %v534
  %v536 = vpop.f32.mrb[0].mxu0
  %v537 = vpop.f32.mrb[0].mxu0
  %v538 = vadd.f32 %v433, %v537
  %v539 = vpop.f32.mrb[0].mxu0
  %540 = vmatprep.mubr.bf16.mxu0 0
  %541 = vmatmul.mubr.bf16.gmra.mrb[0].mxu0 %v470
  %v542 = vpop.f32.mrb[0].mxu0
  %v543 = vadd.f32 %v433, %v542
  %v544 = vpop.f32.mrb[0].mxu0
  %v545 = vpop.f32.mrb[0].mxu0
  %v546 = vadd.f32 %v433, %v545
  %v547 = vpop.f32.mrb[0].mxu0
  %548 = vmatprep.mubr.bf16.mxu0 0
  %549 = vmatmul.mubr.bf16.gmra.mrb[0].mxu0 %v473
  %v550 = vpop.f32.mrb[0].mxu0
  %v551 = vadd.f32 %v433, %v550
  %v552 = vpop.f32.mrb[0].mxu0
  %v553 = vpop.f32.mrb[0].mxu0
  %v554 = vadd.f32 %v433, %v553
  %v555 = vpop.f32.mrb[0].mxu0
  %556 = vmatprep.mubr.bf16.mxu0 0
  %557 = vmatmul.mubr.bf16.gmra.mrb[0].mxu0 %v476
  %v558 = vpop.f32.mrb[0].mxu0
  %v559 = vadd.f32 %v433, %v558
  %v560 = vpop.f32.mrb[0].mxu0
  %v561 = vpop.f32.mrb[0].mxu0
  %v562 = vadd.f32 %v433, %v561
  %v563 = vpop.f32.mrb[0].mxu0
  %564 = vmatprep.mubr.bf16.mxu0 0
  %565 = vmatmul.mubr.bf16.gmra.mrb[0].mxu0 %v479
  %v566 = vpop.f32.mrb[0].mxu0
  %v567 = vadd.f32 %v433, %v566
  %v568 = vpop.f32.mrb[0].mxu0
  %v569 = vpop.f32.mrb[0].mxu0
  %v570 = vadd.f32 %v433, %v569
  %v571 = vpop.f32.mrb[0].mxu0
  %572 = vmatprep.mubr.bf16.mxu0 0
  %573 = vmatmul.mubr.bf16.gmra.mrb[0].mxu0 %v482
  %v574 = vpop.f32.mrb[0].mxu0
  %v575 = vadd.f32 %v433, %v574
  %v576 = vpop.f32.mrb[0].mxu0
  %v577 = vpop.f32.mrb[0].mxu0
  %v578 = vadd.f32 %v433, %v577
  %v579 = vpop.f32.mrb[0].mxu0
  %580 = vdwg.mxu0
  %v581 = vmax.f32 %v519, 0.0
  %v582 = vmax.f32 %v522, 0.0
  %v583 = vmax.f32 %v527, 0.0
  %v584 = vmax.f32 %v530, 0.0
  %v585 = vmax.f32 %v535, 0.0
  %v586 = vmax.f32 %v538, 0.0
  %v587 = vmax.f32 %v543, 0.0
  %v588 = vmax.f32 %v546, 0.0
  %v589 = vmax.f32 %v551, 0.0
  %v590 = vmax.f32 %v554, 0.0
  %v591 = vmax.f32 %v559, 0.0
  %v592 = vmax.f32 %v562, 0.0
  %v593 = vmax.f32 %v567, 0.0
  %v594 = vmax.f32 %v570, 0.0
  %v595 = vmax.f32 %v575, 0.0
  %v596 = vmax.f32 %v578, 0.0
  %v597 = vld [vmem:[%s7] sm:$0x1]
  %v598 = vpack.c.bf16 %v582, %v581
  %v599 = vpack.c.bf16 %v584, %v583
  %v600 = vpack.c.bf16 %v586, %v585
  %v601 = vpack.c.bf16 %v588, %v587
  %v602 = vpack.c.bf16 %v590, %v589
  %v603 = vpack.c.bf16 %v592, %v591
  %v604 = vpack.c.bf16 %v594, %v593
  %v605 = vpack.c.bf16 %v596, %v595
  %v606 = vld [vmem:[#allocation2] sm:$0x1]
  %608 = vset.pattern.permute.xlu0 0
  %609 = vperm.xlu0 %608, %v606
  %v610 = vpop.permute.xlu0 %609
  %v612 = vlaneseq
  %v613 = vshrl.u32 %v612, 7
  %v614 = vsub.s32 0, %v613
  %v615 = vrot.slane %v610, %v614
  %v617 = vsel %vm82, %v597, 0
  %v620 = vsel %vm82, %v598, 0
  %v623 = vsel %vm82, %v599, 0
  %v626 = vsel %vm82, %v600, 0
  %v629 = vsel %vm82, %v601, 0
  %v632 = vsel %vm82, %v602, 0
  %v635 = vsel %vm82, %v603, 0
  %v638 = vsel %vm82, %v604, 0
  %v641 = vsel %vm82, %v605, 0
  %643 = vmatprep.subr.bf16.mxu0 0
  %644 = vmatpush1.bf16.xpose.msra.mxu0 %v620
  %645 = vmatprep.subr.bf16.mxu0 0
  %646 = vmatpush1.bf16.xpose.msra.mxu0 %v623
  %647 = vmatprep.subr.bf16.mxu0 0
  %648 = vmatpush1.bf16.xpose.msra.mxu0 %v626
  %649 = vmatprep.subr.bf16.mxu0 0
  %650 = vmatpush1.bf16.xpose.msra.mxu0 %v629
  %651 = vmatprep.subr.bf16.mxu0 0
  %652 = vmatpush1.bf16.xpose.msra.mxu0 %v632
  %653 = vmatprep.subr.bf16.mxu0 0
  %654 = vmatpush1.bf16.xpose.msra.mxu0 %v635
  %655 = vmatprep.subr.bf16.mxu0 0
  %656 = vmatpush1.bf16.xpose.msra.mxu0 %v638
  %657 = vmatprep.subr.bf16.mxu0 0
  %658 = vmatpush1.bf16.xpose.msra.mxu0 %v641
  %659 = vmatprep.subr.bf16.mxu0 0
  %660 = vmatpush1.bf16.xpose.msra.mxu0 0
  %661 = vmatprep.subr.bf16.mxu0 0
  %662 = vmatpush1.bf16.xpose.msra.mxu0 0
  %663 = vmatprep.subr.bf16.mxu0 0
  %664 = vmatpush1.bf16.xpose.msra.mxu0 0
  %665 = vmatprep.subr.bf16.mxu0 0
  %666 = vmatpush1.bf16.xpose.msra.mxu0 0
  %667 = vmatprep.subr.bf16.mxu0 0
  %668 = vmatpush1.bf16.xpose.msra.mxu0 0
  %669 = vmatprep.subr.bf16.mxu0 0
  %670 = vmatpush1.bf16.xpose.msra.mxu0 0
  %671 = vmatprep.subr.bf16.mxu0 0
  %672 = vmatpush1.bf16.xpose.msra.mxu0 0
  %673 = vmatprep.subr.bf16.mxu0 0
  %674 = vmatpush1.bf16.xpose.msra.mxu0 0
  %675 = vmatprep.mubr.bf16.mxu0 0
  %676 = vmatmul.mubr.bf16.gmra.mrb[0].mxu0 %v617
  %v677 = vpop.f32.mrb[0].mxu0
  %v678 = vadd.f32 %v615, %v677
  %v679 = vpop.f32.mrb[0].mxu0
  %v680 = vpop.f32.mrb[0].mxu0
  %v681 = vpop.f32.mrb[0].mxu0
  %682 = vdwg.mxu0
  %v683 = vxor.u32 %v678, 2147483648
  %v684 = vmul.f32 %v683, 1.442695
  %v685 = vpow.pop %v684
  %v686 = vadd.f32 %v685, 1.0
  %v687 = vrcp.pop %v686
  %v688 = vmul.f32 1.0, %v687
  %689 = vst [vmem:[%s9] sm:$0x1] %v688
  // Predicated region
  $region38: #{_forward_impl.1} parent=0 // pred_check
    _
  $region39: #{_forward_impl.1} parent=0 // pred_check_branch
    %691 = sbr.rel (0) target = $region41
  $region40: #{_forward_impl.1} parent=0 // pred_region
    _
  $region41: #{_forward_impl.1} parent=0 // pred_fallthru
    _
  // Predicated region
  $region42: #{_forward_impl.1} parent=0 // pred_check
    _
  $region43: #{_forward_impl.1} parent=0 // pred_check_branch
    %693 = sbr.rel (0) target = $region45
  $region44: #{_forward_impl.1} parent=0 // pred_region
    _
  $region45: #{_forward_impl.1} parent=0 // pred_fallthru
    _

</llo_original>
